<compile_context>
chip_gen: v5e
topology: v5e:2x2
jax: 0.10.0
libtpu: 0.0.40
codegen_flags: <defaults>
</compile_context>

<pallas_src>
import functools

import jax
import jax.numpy as jnp
from jax import lax
from jax.experimental import pallas as pl
from jax.experimental.pallas import tpu as pltpu


# ------------------------------ fused kernel --------------------------------

def _fused_self_attention_kernel(
    x_ref, wqkv_ref, wout_ref, bout_ref, o_ref, *, heads, dim_heads, scale
):
    # x_ref:(1,T,D)  wqkv_ref:(D,3*H*E)  wout_ref:(H*E,D)  bout_ref:(1,D)  o_ref:(1,T,D)
    t = x_ref.shape[1]
    d = x_ref.shape[2]
    e = dim_heads
    hidden = heads * dim_heads

    x = x_ref[0].astype(jnp.bfloat16)                      # (T, D)
    wqkv = wqkv_ref[...].astype(jnp.bfloat16)              # (D, 3*hidden)
    wout = wout_ref[...].astype(jnp.bfloat16)              # (hidden, D)

    # Fused Q|K|V projection: single MXU pass, f32 accumulation.
    qkv = lax.dot_general(
        x, wqkv, (((1,), (0,)), ((), ())), preferred_element_type=jnp.float32
    )                                                      # (T, 3*hidden) f32
    q = qkv[:, 0 * hidden:1 * hidden]
    k = qkv[:, 1 * hidden:2 * hidden]
    v = qkv[:, 2 * hidden:3 * hidden]

    acc = jnp.zeros((t, d), jnp.float32)
    # Static unroll over heads (H is small); output projection is folded into
    # the head loop:  out = sum_h o_h @ Wout[h*E:(h+1)*E, :]  + bias.
    for h in range(heads):
        qh = q[:, h * e:(h + 1) * e].astype(jnp.bfloat16)  # (T, E)
        kh = k[:, h * e:(h + 1) * e].astype(jnp.bfloat16)  # (T, E)
        vh = v[:, h * e:(h + 1) * e].astype(jnp.bfloat16)  # (T, E)

        # q k^T via transposed contraction (no materialized transpose).
        s = lax.dot_general(
            qh, kh, (((1,), (1,)), ((), ())),
            preferred_element_type=jnp.float32,
        ) * scale                                          # (T, T) f32
        s = s - jnp.max(s, axis=-1, keepdims=True)         # stable softmax, f32
        p = jnp.exp(s)
        p = p * pl.reciprocal(jnp.sum(p, axis=-1, keepdims=True), approx=True)

        oh = lax.dot_general(
            p.astype(jnp.bfloat16), vh, (((1,), (0,)), ((), ())),
            preferred_element_type=jnp.float32,
        )                                                  # (T, E) f32

        acc = acc + lax.dot_general(
            oh.astype(jnp.bfloat16), wout[h * e:(h + 1) * e, :],
            (((1,), (0,)), ((), ())), preferred_element_type=jnp.float32,
        )                                                  # (T, D) f32

    o_ref[0] = (acc + bout_ref[...]).astype(o_ref.dtype)


# -------------------------------- wrapper ------------------------------------

def self_attention_forward(x, params, heads, dim_heads):
    """Reproduces SelfAttention.forward(x) (kv = x) in a single pallas_call."""
    b, t, d = x.shape
    hidden = heads * dim_heads

    # nn.Linear stores W:(out, in); y = x @ W^T.  Fuse q|k|v weights once.
    wqkv = jnp.concatenate([params["wq"].T, params["wkv"].T], axis=1)  # (d, 3*hidden)
    wout = params["wout"].T                                            # (hidden, d)
    bout = params["bout"].reshape(1, d)

    kernel = functools.partial(
        _fused_self_attention_kernel,
        heads=heads, dim_heads=dim_heads, scale=dim_heads ** (-0.5),
    )
    return pl.pallas_call(
        kernel,
        out_shape=jax.ShapeDtypeStruct((b, t, d), x.dtype),
        grid=(b,),
        in_specs=[
            pl.BlockSpec((1, t, d), lambda i: (i, 0, 0)),      # x, one batch per step
            pl.BlockSpec((d, 3 * hidden), lambda i: (0, 0)),   # fused qkv weight (resident)
            pl.BlockSpec((hidden, d), lambda i: (0, 0)),       # out weight (resident)
            pl.BlockSpec((1, d), lambda i: (0, 0)),            # out bias (resident)
        ],
        out_specs=pl.BlockSpec((1, t, d), lambda i: (i, 0, 0)),
        compiler_params=pltpu.CompilerParams(dimension_semantics=("parallel",)),
    )(x, wqkv, wout, bout)


# ------------------------------- reference -----------------------------------

def self_attention_reference(x, params, heads, dim_heads):
    b, t, d = x.shape
    h, e = heads, dim_heads
    q = x @ params["wq"].T
    kv = x @ params["wkv"].T
    k, v = jnp.split(kv, 2, axis=-1)
    merge = lambda y: y.reshape(b, t, h, e).transpose(0, 2, 1, 3).reshape(b * h, t, e)
    q, k, v = map(merge, (q, k, v))
    dots = jnp.einsum("bie,bje->bij", q, k) * e ** (-0.5)
    dots = jax.nn.softmax(dots, axis=-1)
    out = jnp.einsum("bij,bje->bie", dots, v)
    out = out.reshape(b, h, t, e).transpose(0, 2, 1, 3).reshape(b, t, h * e)
    return out @ params["wout"].T + params["bout"]


# ---------------------------------- main --------------------------------------

if __name__ == "__main__":
    # SelfAttention(dim=32, heads=4) -> dim_heads = 8, dim_hidden = 32
    B, T, DIM, HEADS = 2, 8, 32, 4
    DIM_HEADS = DIM // HEADS
    DIM_HIDDEN = DIM_HEADS * HEADS

    key = jax.random.PRNGKey(0)
    kx, kq, kkv, kwo, kbo = jax.random.split(key, 5)

    x = jax.random.normal(kx, (B, T, DIM), dtype=jnp.float32)

    # deterministic synthetic parameters (nn.Linear weight shapes: (out, in))
    params = {
        "wq": jax.random.normal(kq, (DIM_HIDDEN, DIM), dtype=jnp.float32) * 0.1,
        "wkv": jax.random.normal(kkv, (2 * DIM_HIDDEN, DIM), dtype=jnp.float32) * 0.1,
        "wout": jax.random.normal(kwo, (DIM, DIM_HIDDEN), dtype=jnp.float32) * 0.1,
        "bout": jax.random.normal(kbo, (DIM,), dtype=jnp.float32) * 0.1,
    }

    out = jax.block_until_ready(self_attention_forward(x, params, HEADS, DIM_HEADS))
    ref = self_attention_reference(x, params, HEADS, DIM_HEADS)

    assert out.shape == (B, T, DIM)
    # bf16 MXU inputs with f32 accumulation -> compare at bf16-level tolerance.
    assert jnp.allclose(out, ref, atol=5e-2, rtol=5e-2), "mismatch vs JAX reference"

    print("KERNEL_OK")
</pallas_src>

<mosaic_0001>
module attributes {stable_mosaic.version = 11 : i64} {
  func.func @_fused_self_attention_kernel(%arg0: i32, %arg1: memref<1x8x32xf32, #tpu.memory_space<vmem>>, %arg2: memref<32x96xf32, #tpu.memory_space<vmem>>, %arg3: memref<32x32xf32, #tpu.memory_space<vmem>>, %arg4: memref<1x32xf32, #tpu.memory_space<vmem>>, %arg5: memref<1x8x32xf32, #tpu.memory_space<vmem>>) attributes {dimension_semantics = [#tpu.dimension_semantics<parallel>], iteration_bounds = array<i64: 2>, scalar_prefetch = 0 : i64, scratch_operands = 0 : i64, tpu.core_type = #tpu.core_type<tc>, window_params = [{transform_indices = @transform_0, window_bounds = array<i64: 1, 8, 32>}, {pipeline_mode = #tpu.pipeline_mode<synchronous>, transform_indices = @transform_1, window_bounds = array<i64: 32, 96>}, {pipeline_mode = #tpu.pipeline_mode<synchronous>, transform_indices = @transform_2, window_bounds = array<i64: 32, 32>}, {pipeline_mode = #tpu.pipeline_mode<synchronous>, transform_indices = @transform_3, window_bounds = array<i64: 1, 32>}, {transform_indices = @transform_4, window_bounds = array<i64: 1, 8, 32>}]} {
    %c0 = arith.constant 0 : index
    %c0_0 = arith.constant 0 : index
    %c0_1 = arith.constant 0 : index
    %0 = vector.load %arg1[%c0, %c0_0, %c0_1] : memref<1x8x32xf32, #tpu.memory_space<vmem>>, vector<1x8x32xf32>
    %1 = vector.shape_cast %0 : vector<1x8x32xf32> to vector<8x32xf32>
    %2 = arith.truncf %1 : vector<8x32xf32> to vector<8x32xbf16>
    %c0_2 = arith.constant 0 : index
    %c0_3 = arith.constant 0 : index
    %3 = vector.load %arg2[%c0_2, %c0_3] : memref<32x96xf32, #tpu.memory_space<vmem>>, vector<32x96xf32>
    %4 = arith.truncf %3 : vector<32x96xf32> to vector<32x96xbf16>
    %c0_4 = arith.constant 0 : index
    %c0_5 = arith.constant 0 : index
    %5 = vector.load %arg3[%c0_4, %c0_5] : memref<32x32xf32, #tpu.memory_space<vmem>>, vector<32x32xf32>
    %6 = arith.truncf %5 : vector<32x32xf32> to vector<32x32xbf16>
    %cst = arith.constant dense<0.000000e+00> : vector<8x96xf32>
    %7 = tpu.matmul %2, %4, %cst {dimension_numbers = #tpu.dot_dimension_numbers<[1], [0], [0], [1], [0, 0, 1, 1], [], []>} : vector<8x32xbf16>, vector<32x96xbf16>, vector<8x96xf32> -> vector<8x96xf32>
    %8 = vector.extract_strided_slice %7 {offsets = [0, 0], sizes = [8, 32], strides = [1, 1]} : vector<8x96xf32> to vector<8x32xf32>
    %9 = vector.extract_strided_slice %7 {offsets = [0, 32], sizes = [8, 32], strides = [1, 1]} : vector<8x96xf32> to vector<8x32xf32>
    %10 = vector.extract_strided_slice %7 {offsets = [0, 64], sizes = [8, 32], strides = [1, 1]} : vector<8x96xf32> to vector<8x32xf32>
    %cst_6 = arith.constant 0.000000e+00 : f32
    %11 = vector.broadcast %cst_6 : f32 to vector<8x32xf32>
    %12 = vector.extract_strided_slice %8 {offsets = [0, 0], sizes = [8, 8], strides = [1, 1]} : vector<8x32xf32> to vector<8x8xf32>
    %13 = arith.truncf %12 : vector<8x8xf32> to vector<8x8xbf16>
    %14 = vector.extract_strided_slice %9 {offsets = [0, 0], sizes = [8, 8], strides = [1, 1]} : vector<8x32xf32> to vector<8x8xf32>
    %15 = arith.truncf %14 : vector<8x8xf32> to vector<8x8xbf16>
    %16 = vector.extract_strided_slice %10 {offsets = [0, 0], sizes = [8, 8], strides = [1, 1]} : vector<8x32xf32> to vector<8x8xf32>
    %17 = arith.truncf %16 : vector<8x8xf32> to vector<8x8xbf16>
    %cst_7 = arith.constant dense<0.000000e+00> : vector<8x8xf32>
    %18 = tpu.matmul %13, %15, %cst_7 {dimension_numbers = #tpu.dot_dimension_numbers<[1], [1], [0], [0], [0, 0, 1, 0], [], []>} : vector<8x8xbf16>, vector<8x8xbf16>, vector<8x8xf32> -> vector<8x8xf32>
    %cst_8 = arith.constant 0.353553385 : f32
    %19 = vector.broadcast %cst_8 : f32 to vector<8x8xf32>
    %20 = arith.mulf %18, %19 : vector<8x8xf32>
    %cst_9 = arith.constant dense<0xFF800000> : vector<8xf32>
    %21 = vector.multi_reduction <maximumf>, %20, %cst_9 [1] : vector<8x8xf32> to vector<8xf32>
    %22 = vector.shape_cast %21 : vector<8xf32> to vector<8x1xf32>
    %23 = vector.broadcast %22 : vector<8x1xf32> to vector<8x8xf32>
    %24 = arith.subf %20, %23 : vector<8x8xf32>
    %25 = math.exp %24 : vector<8x8xf32>
    %cst_10 = arith.constant dense<0.000000e+00> : vector<8xf32>
    %26 = vector.multi_reduction <add>, %25, %cst_10 [1] : vector<8x8xf32> to vector<8xf32>
    %27 = vector.shape_cast %26 : vector<8xf32> to vector<8x1xf32>
    %28 = tpu.reciprocal %27 {approx = true} : vector<8x1xf32> -> vector<8x1xf32>
    %29 = vector.broadcast %28 : vector<8x1xf32> to vector<8x8xf32>
    %30 = arith.mulf %25, %29 : vector<8x8xf32>
    %31 = arith.truncf %30 : vector<8x8xf32> to vector<8x8xbf16>
    %cst_11 = arith.constant dense<0.000000e+00> : vector<8x8xf32>
    %32 = tpu.matmul %31, %17, %cst_11 {dimension_numbers = #tpu.dot_dimension_numbers<[1], [0], [0], [1], [0, 0, 1, 1], [], []>} : vector<8x8xbf16>, vector<8x8xbf16>, vector<8x8xf32> -> vector<8x8xf32>
    %33 = arith.truncf %32 : vector<8x8xf32> to vector<8x8xbf16>
    %34 = vector.extract_strided_slice %6 {offsets = [0, 0], sizes = [8, 32], strides = [1, 1]} : vector<32x32xbf16> to vector<8x32xbf16>
    %cst_12 = arith.constant dense<0.000000e+00> : vector<8x32xf32>
    %35 = tpu.matmul %33, %34, %cst_12 {dimension_numbers = #tpu.dot_dimension_numbers<[1], [0], [0], [1], [0, 0, 1, 1], [], []>} : vector<8x8xbf16>, vector<8x32xbf16>, vector<8x32xf32> -> vector<8x32xf32>
    %36 = arith.addf %11, %35 : vector<8x32xf32>
    %37 = vector.extract_strided_slice %8 {offsets = [0, 8], sizes = [8, 8], strides = [1, 1]} : vector<8x32xf32> to vector<8x8xf32>
    %38 = arith.truncf %37 : vector<8x8xf32> to vector<8x8xbf16>
    %39 = vector.extract_strided_slice %9 {offsets = [0, 8], sizes = [8, 8], strides = [1, 1]} : vector<8x32xf32> to vector<8x8xf32>
    %40 = arith.truncf %39 : vector<8x8xf32> to vector<8x8xbf16>
    %41 = vector.extract_strided_slice %10 {offsets = [0, 8], sizes = [8, 8], strides = [1, 1]} : vector<8x32xf32> to vector<8x8xf32>
    %42 = arith.truncf %41 : vector<8x8xf32> to vector<8x8xbf16>
    %cst_13 = arith.constant dense<0.000000e+00> : vector<8x8xf32>
    %43 = tpu.matmul %38, %40, %cst_13 {dimension_numbers = #tpu.dot_dimension_numbers<[1], [1], [0], [0], [0, 0, 1, 0], [], []>} : vector<8x8xbf16>, vector<8x8xbf16>, vector<8x8xf32> -> vector<8x8xf32>
    %cst_14 = arith.constant 0.353553385 : f32
    %44 = vector.broadcast %cst_14 : f32 to vector<8x8xf32>
    %45 = arith.mulf %43, %44 : vector<8x8xf32>
    %cst_15 = arith.constant dense<0xFF800000> : vector<8xf32>
    %46 = vector.multi_reduction <maximumf>, %45, %cst_15 [1] : vector<8x8xf32> to vector<8xf32>
    %47 = vector.shape_cast %46 : vector<8xf32> to vector<8x1xf32>
    %48 = vector.broadcast %47 : vector<8x1xf32> to vector<8x8xf32>
    %49 = arith.subf %45, %48 : vector<8x8xf32>
    %50 = math.exp %49 : vector<8x8xf32>
    %cst_16 = arith.constant dense<0.000000e+00> : vector<8xf32>
    %51 = vector.multi_reduction <add>, %50, %cst_16 [1] : vector<8x8xf32> to vector<8xf32>
    %52 = vector.shape_cast %51 : vector<8xf32> to vector<8x1xf32>
    %53 = tpu.reciprocal %52 {approx = true} : vector<8x1xf32> -> vector<8x1xf32>
    %54 = vector.broadcast %53 : vector<8x1xf32> to vector<8x8xf32>
    %55 = arith.mulf %50, %54 : vector<8x8xf32>
    %56 = arith.truncf %55 : vector<8x8xf32> to vector<8x8xbf16>
    %cst_17 = arith.constant dense<0.000000e+00> : vector<8x8xf32>
    %57 = tpu.matmul %56, %42, %cst_17 {dimension_numbers = #tpu.dot_dimension_numbers<[1], [0], [0], [1], [0, 0, 1, 1], [], []>} : vector<8x8xbf16>, vector<8x8xbf16>, vector<8x8xf32> -> vector<8x8xf32>
    %58 = arith.truncf %57 : vector<8x8xf32> to vector<8x8xbf16>
    %59 = vector.extract_strided_slice %6 {offsets = [8, 0], sizes = [8, 32], strides = [1, 1]} : vector<32x32xbf16> to vector<8x32xbf16>
    %cst_18 = arith.constant dense<0.000000e+00> : vector<8x32xf32>
    %60 = tpu.matmul %58, %59, %cst_18 {dimension_numbers = #tpu.dot_dimension_numbers<[1], [0], [0], [1], [0, 0, 1, 1], [], []>} : vector<8x8xbf16>, vector<8x32xbf16>, vector<8x32xf32> -> vector<8x32xf32>
    %61 = arith.addf %36, %60 : vector<8x32xf32>
    %62 = vector.extract_strided_slice %8 {offsets = [0, 16], sizes = [8, 8], strides = [1, 1]} : vector<8x32xf32> to vector<8x8xf32>
    %63 = arith.truncf %62 : vector<8x8xf32> to vector<8x8xbf16>
    %64 = vector.extract_strided_slice %9 {offsets = [0, 16], sizes = [8, 8], strides = [1, 1]} : vector<8x32xf32> to vector<8x8xf32>
    %65 = arith.truncf %64 : vector<8x8xf32> to vector<8x8xbf16>
    %66 = vector.extract_strided_slice %10 {offsets = [0, 16], sizes = [8, 8], strides = [1, 1]} : vector<8x32xf32> to vector<8x8xf32>
    %67 = arith.truncf %66 : vector<8x8xf32> to vector<8x8xbf16>
    %cst_19 = arith.constant dense<0.000000e+00> : vector<8x8xf32>
    %68 = tpu.matmul %63, %65, %cst_19 {dimension_numbers = #tpu.dot_dimension_numbers<[1], [1], [0], [0], [0, 0, 1, 0], [], []>} : vector<8x8xbf16>, vector<8x8xbf16>, vector<8x8xf32> -> vector<8x8xf32>
    %cst_20 = arith.constant 0.353553385 : f32
    %69 = vector.broadcast %cst_20 : f32 to vector<8x8xf32>
    %70 = arith.mulf %68, %69 : vector<8x8xf32>
    %cst_21 = arith.constant dense<0xFF800000> : vector<8xf32>
    %71 = vector.multi_reduction <maximumf>, %70, %cst_21 [1] : vector<8x8xf32> to vector<8xf32>
    %72 = vector.shape_cast %71 : vector<8xf32> to vector<8x1xf32>
    %73 = vector.broadcast %72 : vector<8x1xf32> to vector<8x8xf32>
    %74 = arith.subf %70, %73 : vector<8x8xf32>
    %75 = math.exp %74 : vector<8x8xf32>
    %cst_22 = arith.constant dense<0.000000e+00> : vector<8xf32>
    %76 = vector.multi_reduction <add>, %75, %cst_22 [1] : vector<8x8xf32> to vector<8xf32>
    %77 = vector.shape_cast %76 : vector<8xf32> to vector<8x1xf32>
    %78 = tpu.reciprocal %77 {approx = true} : vector<8x1xf32> -> vector<8x1xf32>
    %79 = vector.broadcast %78 : vector<8x1xf32> to vector<8x8xf32>
    %80 = arith.mulf %75, %79 : vector<8x8xf32>
    %81 = arith.truncf %80 : vector<8x8xf32> to vector<8x8xbf16>
    %cst_23 = arith.constant dense<0.000000e+00> : vector<8x8xf32>
    %82 = tpu.matmul %81, %67, %cst_23 {dimension_numbers = #tpu.dot_dimension_numbers<[1], [0], [0], [1], [0, 0, 1, 1], [], []>} : vector<8x8xbf16>, vector<8x8xbf16>, vector<8x8xf32> -> vector<8x8xf32>
    %83 = arith.truncf %82 : vector<8x8xf32> to vector<8x8xbf16>
    %84 = vector.extract_strided_slice %6 {offsets = [16, 0], sizes = [8, 32], strides = [1, 1]} : vector<32x32xbf16> to vector<8x32xbf16>
    %cst_24 = arith.constant dense<0.000000e+00> : vector<8x32xf32>
    %85 = tpu.matmul %83, %84, %cst_24 {dimension_numbers = #tpu.dot_dimension_numbers<[1], [0], [0], [1], [0, 0, 1, 1], [], []>} : vector<8x8xbf16>, vector<8x32xbf16>, vector<8x32xf32> -> vector<8x32xf32>
    %86 = arith.addf %61, %85 : vector<8x32xf32>
    %87 = vector.extract_strided_slice %8 {offsets = [0, 24], sizes = [8, 8], strides = [1, 1]} : vector<8x32xf32> to vector<8x8xf32>
    %88 = arith.truncf %87 : vector<8x8xf32> to vector<8x8xbf16>
    %89 = vector.extract_strided_slice %9 {offsets = [0, 24], sizes = [8, 8], strides = [1, 1]} : vector<8x32xf32> to vector<8x8xf32>
    %90 = arith.truncf %89 : vector<8x8xf32> to vector<8x8xbf16>
    %91 = vector.extract_strided_slice %10 {offsets = [0, 24], sizes = [8, 8], strides = [1, 1]} : vector<8x32xf32> to vector<8x8xf32>
    %92 = arith.truncf %91 : vector<8x8xf32> to vector<8x8xbf16>
    %cst_25 = arith.constant dense<0.000000e+00> : vector<8x8xf32>
    %93 = tpu.matmul %88, %90, %cst_25 {dimension_numbers = #tpu.dot_dimension_numbers<[1], [1], [0], [0], [0, 0, 1, 0], [], []>} : vector<8x8xbf16>, vector<8x8xbf16>, vector<8x8xf32> -> vector<8x8xf32>
    %cst_26 = arith.constant 0.353553385 : f32
    %94 = vector.broadcast %cst_26 : f32 to vector<8x8xf32>
    %95 = arith.mulf %93, %94 : vector<8x8xf32>
    %cst_27 = arith.constant dense<0xFF800000> : vector<8xf32>
    %96 = vector.multi_reduction <maximumf>, %95, %cst_27 [1] : vector<8x8xf32> to vector<8xf32>
    %97 = vector.shape_cast %96 : vector<8xf32> to vector<8x1xf32>
    %98 = vector.broadcast %97 : vector<8x1xf32> to vector<8x8xf32>
    %99 = arith.subf %95, %98 : vector<8x8xf32>
    %100 = math.exp %99 : vector<8x8xf32>
    %cst_28 = arith.constant dense<0.000000e+00> : vector<8xf32>
    %101 = vector.multi_reduction <add>, %100, %cst_28 [1] : vector<8x8xf32> to vector<8xf32>
    %102 = vector.shape_cast %101 : vector<8xf32> to vector<8x1xf32>
    %103 = tpu.reciprocal %102 {approx = true} : vector<8x1xf32> -> vector<8x1xf32>
    %104 = vector.broadcast %103 : vector<8x1xf32> to vector<8x8xf32>
    %105 = arith.mulf %100, %104 : vector<8x8xf32>
    %106 = arith.truncf %105 : vector<8x8xf32> to vector<8x8xbf16>
    %cst_29 = arith.constant dense<0.000000e+00> : vector<8x8xf32>
    %107 = tpu.matmul %106, %92, %cst_29 {dimension_numbers = #tpu.dot_dimension_numbers<[1], [0], [0], [1], [0, 0, 1, 1], [], []>} : vector<8x8xbf16>, vector<8x8xbf16>, vector<8x8xf32> -> vector<8x8xf32>
    %108 = arith.truncf %107 : vector<8x8xf32> to vector<8x8xbf16>
    %109 = vector.extract_strided_slice %6 {offsets = [24, 0], sizes = [8, 32], strides = [1, 1]} : vector<32x32xbf16> to vector<8x32xbf16>
    %cst_30 = arith.constant dense<0.000000e+00> : vector<8x32xf32>
    %110 = tpu.matmul %108, %109, %cst_30 {dimension_numbers = #tpu.dot_dimension_numbers<[1], [0], [0], [1], [0, 0, 1, 1], [], []>} : vector<8x8xbf16>, vector<8x32xbf16>, vector<8x32xf32> -> vector<8x32xf32>
    %111 = arith.addf %86, %110 : vector<8x32xf32>
    %c0_31 = arith.constant 0 : index
    %c0_32 = arith.constant 0 : index
    %112 = vector.load %arg4[%c0_31, %c0_32] : memref<1x32xf32, #tpu.memory_space<vmem>>, vector<1x32xf32>
    %113 = vector.broadcast %112 : vector<1x32xf32> to vector<8x32xf32>
    %114 = arith.addf %111, %113 : vector<8x32xf32>
    %c0_33 = arith.constant 0 : index
    %c0_34 = arith.constant 0 : index
    %c0_35 = arith.constant 0 : index
    %115 = vector.load %arg5[%c0_33, %c0_34, %c0_35] : memref<1x8x32xf32, #tpu.memory_space<vmem>>, vector<1x8x32xf32>
    %116 = vector.shape_cast %115 : vector<1x8x32xf32> to vector<8x32xf32>
    %117 = vector.shape_cast %114 : vector<8x32xf32> to vector<1x8x32xf32>
    tpu.vector_store %arg5[%c0_33, %c0_34, %c0_35], %117 {strides = array<i32>} : memref<1x8x32xf32, #tpu.memory_space<vmem>>, vector<1x8x32xf32>,
    return
  }
  func.func @transform_0(%arg0: i32) -> (i32, i32, i32) {
    %c0_i32 = arith.constant 0 : i32
    %c0_i32_0 = arith.constant 0 : i32
    %c0_i32_1 = arith.constant 0 : i32
    return %arg0, %c0_i32, %c0_i32_0 : i32, i32, i32
  }
  func.func @transform_1(%arg0: i32) -> (i32, i32) {
    %c0_i32 = arith.constant 0 : i32
    %c0_i32_0 = arith.constant 0 : i32
    %c0_i32_1 = arith.constant 0 : i32
    return %c0_i32, %c0_i32_0 : i32, i32
  }
  func.func @transform_2(%arg0: i32) -> (i32, i32) {
    %c0_i32 = arith.constant 0 : i32
    %c0_i32_0 = arith.constant 0 : i32
    %c0_i32_1 = arith.constant 0 : i32
    return %c0_i32, %c0_i32_0 : i32, i32
  }
  func.func @transform_3(%arg0: i32) -> (i32, i32) {
    %c0_i32 = arith.constant 0 : i32
    %c0_i32_0 = arith.constant 0 : i32
    %c0_i32_1 = arith.constant 0 : i32
    return %c0_i32, %c0_i32_0 : i32, i32
  }
  func.func @transform_4(%arg0: i32) -> (i32, i32, i32) {
    %c0_i32 = arith.constant 0 : i32
    %c0_i32_0 = arith.constant 0 : i32
    %c0_i32_1 = arith.constant 0 : i32
    return %arg0, %c0_i32, %c0_i32_0 : i32, i32, i32
  }
}

</mosaic_0001>

<llo_original>
// kernel: tpu_custom_call.1
$region0: #{tpu_custom_call.1}
  #allocation0 [shape = 'u32[]', space=smem, size = 0x4, offset = 0x4, fixed_abs, tag = 'smem constant byte address 0x4 - core index']
  #allocation1 [shape = 'u32[72,128]{1,0:T(1,128)}', space=vmem, size = 0x9000, scoped, tag = 'internal scratch']
  %s0 = inlined_call_operand.hbm [shape: f32[2,8,32], index: 0, kind: input, shape index: {}]
  %s1 = inlined_call_operand.hbm [shape: f32[32,96], index: 1, kind: input, shape index: {}]
  %s2 = inlined_call_operand.hbm [shape: f32[32,32], index: 2, kind: input, shape index: {}]
  %s3 = inlined_call_operand.vmem [shape: f32[1,32], index: 3, kind: input, shape index: {}]
  %s4 = inlined_call_operand.hbm [shape: f32[2,8,32], index: 4, kind: output, shape index: {}]
  %s5 = sld [smem:[#allocation0]]
  $region61: #{tpu_custom_call.1} parent=0
    _
  %s7 = ssub.s32 1, %s5
  %s8 = scalar_select 0, %s7, %s5
  $region1: #{tpu_custom_call.1} parent=0
    #allocation2 [shape = 'u8[8192]{0}', space=vmem, size = 0x2000, scoped, tag = 'input window, operand 0']
    #allocation3 [shape = 's32[2]{0}', space=sflag, size = 0x8, scoped, tag = 'scoped memory for tpu_custom_call.1']
    #allocation4 [shape = 's32[2]{0}', space=sflag, size = 0x8, scoped, tag = 'scoped memory for tpu_custom_call.1']
    #allocation5 [shape = 'u8[16384]{0}', space=vmem, size = 0x4000, scoped, tag = 'input window, operand 1, single buffered']
    #allocation6 [shape = 's32[1]{0}', space=sflag, size = 0x4, scoped, tag = 'scoped memory for tpu_custom_call.1']
    #allocation7 [shape = 'u8[16384]{0}', space=vmem, size = 0x4000, scoped, tag = 'input window, operand 2, single buffered']
    #allocation8 [shape = 'u8[8192]{0}', space=vmem, size = 0x2000, scoped, tag = 'output window, operand 0']
    %9 = vsyncpa [#allocation3], 0
    %s10 = scalar_lea.sflag [#allocation3], 1
    %11 = vsyncpa %s10, 0
    %12 = vsyncpa [#allocation6], 0
    %13 = vsyncpa [#allocation4], 0
    %s14 = scalar_lea.sflag [#allocation4], 1
    %15 = vsyncpa %s14, 0
    loop: start=0, step=1, limit=4
    $region2: #{tpu_custom_call.1} parent=1 // loop_pre_header
      _
    $region3: #{tpu_custom_call.1} parent=1 // loop_header
      %s17 = sphi 0, %s21
      %p18 = scmp.ge.s32.totalorder %s17, 4
      %s27 = sphi 0, %s29
      %s30 = sphi 0, %s27
      %s31 = sphi 0, %s30
      %s47 = sphi 0, %s31
      %s51 = sphi 0, %s51
      %s53 = sphi 0, %s51
      %s54 = sphi 0, %s53
      %s68 = sphi 0, %s54
      %s72 = sphi 0, %s72
      %s74 = sphi 0, %s72
      %s75 = sphi 0, %s74
      %s89 = sphi 0, %s75
      %s93 = sphi 0, %s93
      %s95 = sphi 0, %s93
      %s96 = sphi 0, %s95
      %s110 = sphi 0, %s96
      %s116 = sphi 0, %s118
      %s119 = sphi 0, %s116
      %s120 = sphi 0, %s119
      %s136 = sphi 0, %s120
    $region4: #{tpu_custom_call.1} parent=1 // loop_header_branch
      %20 = sbr.rel (%p18) target = $region8
    $region5: #{tpu_custom_call.1} parent=1 // loop_body
      %s22 = ssub.s32 %s17, 1
      %s23 = ssub.s32 %s17, 2
      %s24 = sadd.s32 %s17, 1
      %s25 = ssub.s32 %s17, %s24
      %p26 = scmp.eq.s32.totalorder %s25, 0
      %s28 = sadd.s32 %s27, 1
      %s29 = scalar_select %p26, %s27, %s28
      %p32 = pneg %p26
      %p33 = scmp.eq.s32.totalorder %s17, 1
      %p34 = por %p32, %p33
      %p35 = scmp.ne.s32.totalorder %s27, %s30
      %p36 = scmp.eq.s32.totalorder %s17, 0
      %p37 = por %p35, %p36
      %p38 = scmp.ne.s32.totalorder %s27, %s30
      %p39 = scmp.eq.s32.totalorder %s22, 1
      %p40 = por %p38, %p39
      %p41 = scmp.ne.s32.totalorder %s30, %s31
      %p42 = scmp.eq.s32.totalorder %s22, 0
      %p43 = por %p41, %p42
      %p44 = scmp.ne.s32.totalorder %s30, %s31
      %p45 = scmp.eq.s32.totalorder %s23, 1
      %p46 = por %p44, %p45
      %p48 = scmp.ne.s32.totalorder %s31, %s47
      %p49 = scmp.eq.s32.totalorder %s23, 0
      %p50 = por %p48, %p49
      %s52 = sadd.s32 %s51, 1
      %p55 = scmp.eq.s32.totalorder %s17, 1
      %p56 = scmp.ne.s32.totalorder %s51, %s53
      %p57 = scmp.eq.s32.totalorder %s17, 0
      %p58 = por %p56, %p57
      %p59 = scmp.ne.s32.totalorder %s51, %s53
      %p60 = scmp.eq.s32.totalorder %s22, 1
      %p61 = por %p59, %p60
      %p62 = scmp.ne.s32.totalorder %s53, %s54
      %p63 = scmp.eq.s32.totalorder %s22, 0
      %p64 = por %p62, %p63
      %p65 = scmp.ne.s32.totalorder %s53, %s54
      %p66 = scmp.eq.s32.totalorder %s23, 1
      %p67 = por %p65, %p66
      %p69 = scmp.ne.s32.totalorder %s54, %s68
      %p70 = scmp.eq.s32.totalorder %s23, 0
      %p71 = por %p69, %p70
      %s73 = sadd.s32 %s72, 1
      %p76 = scmp.eq.s32.totalorder %s17, 1
      %p77 = scmp.ne.s32.totalorder %s72, %s74
      %p78 = scmp.eq.s32.totalorder %s17, 0
      %p79 = por %p77, %p78
      %p80 = scmp.ne.s32.totalorder %s72, %s74
      %p81 = scmp.eq.s32.totalorder %s22, 1
      %p82 = por %p80, %p81
      %p83 = scmp.ne.s32.totalorder %s74, %s75
      %p84 = scmp.eq.s32.totalorder %s22, 0
      %p85 = por %p83, %p84
      %p86 = scmp.ne.s32.totalorder %s74, %s75
      %p87 = scmp.eq.s32.totalorder %s23, 1
      %p88 = por %p86, %p87
      %p90 = scmp.ne.s32.totalorder %s75, %s89
      %p91 = scmp.eq.s32.totalorder %s23, 0
      %p92 = por %p90, %p91
      %s94 = sadd.s32 %s93, 1
      %p97 = scmp.eq.s32.totalorder %s17, 1
      %p98 = scmp.ne.s32.totalorder %s93, %s95
      %p99 = scmp.eq.s32.totalorder %s17, 0
      %p100 = por %p98, %p99
      %p101 = scmp.ne.s32.totalorder %s93, %s95
      %p102 = scmp.eq.s32.totalorder %s22, 1
      %p103 = por %p101, %p102
      %p104 = scmp.ne.s32.totalorder %s95, %s96
      %p105 = scmp.eq.s32.totalorder %s22, 0
      %p106 = por %p104, %p105
      %p107 = scmp.ne.s32.totalorder %s95, %s96
      %p108 = scmp.eq.s32.totalorder %s23, 1
      %p109 = por %p107, %p108
      %p111 = scmp.ne.s32.totalorder %s96, %s110
      %p112 = scmp.eq.s32.totalorder %s23, 0
      %p113 = por %p111, %p112
      %s114 = ssub.s32 %s17, %s24
      %p115 = scmp.eq.s32.totalorder %s114, 0
      %s117 = sadd.s32 %s116, 1
      %s118 = scalar_select %p115, %s116, %s117
      %p121 = pneg %p115
      %p122 = scmp.eq.s32.totalorder %s17, 1
      %p123 = por %p121, %p122
      %p124 = scmp.ne.s32.totalorder %s116, %s119
      %p125 = scmp.eq.s32.totalorder %s17, 0
      %p126 = por %p124, %p125
      %p127 = scmp.ne.s32.totalorder %s116, %s119
      %p128 = scmp.eq.s32.totalorder %s22, 1
      %p129 = por %p127, %p128
      %p130 = scmp.ne.s32.totalorder %s119, %s120
      %p131 = scmp.eq.s32.totalorder %s22, 0
      %p132 = por %p130, %p131
      %p133 = scmp.ne.s32.totalorder %s119, %s120
      %p134 = scmp.eq.s32.totalorder %s23, 1
      %p135 = por %p133, %p134
      %p137 = scmp.ne.s32.totalorder %s120, %s136
      %p138 = scmp.eq.s32.totalorder %s23, 0
      %p139 = por %p137, %p138
      %p140 = scmp.le.s32.totalorder 1, %s17
      %p141 = scmp.lt.s32.totalorder %s17, 3
      %p142 = pnand %p140, %p141
      %p143 = pneg %p142
      // Predicated region
      $region9: #{tpu_custom_call.1} parent=5 // pred_check
        _
      $region10: #{tpu_custom_call.1} parent=5 // pred_check_branch
        %145 = sbr.rel (%p142) target = $region12
      $region11: #{tpu_custom_call.1} parent=5 // pred_region
        %s146 = ssub.s32 %s17, 1
        // Predicated region
        $region13: #{tpu_custom_call.1} parent=11 // pred_check
          %p147 = pneg %p64
        $region14: #{tpu_custom_call.1} parent=11 // pred_check_branch
          %149 = sbr.rel (%p147) target = $region16
        $region15: #{tpu_custom_call.1} parent=11 // pred_region
          %151 = vsyncadd [#allocation6], 0
          %s152 = sshll.u32 %s1, 4
          %s153 = int_to_ptr.hbm [resolvable:$true] %s152
          %s154 = sshll.u32 [#allocation5], 4
          %s155 = int_to_ptr.vmem [resolvable:$true] %s154
          %160 = dma.hbm_to_vmem [thread:$0]  %s153, 512, %s155, [#allocation6], 128, 128, 8
        $region16: #{tpu_custom_call.1} parent=11 // pred_fallthru
          _
        // Predicated region
        $region17: #{tpu_custom_call.1} parent=11 // pred_check
          %p161 = pneg %p85
        $region18: #{tpu_custom_call.1} parent=11 // pred_check_branch
          %163 = sbr.rel (%p161) target = $region20
        $region19: #{tpu_custom_call.1} parent=11 // pred_region
          %165 = vsyncadd [#allocation6], 0
          %s166 = sshll.u32 %s2, 4
          %s167 = int_to_ptr.hbm [resolvable:$true] %s166
          %s168 = sshll.u32 [#allocation7], 4
          %s169 = int_to_ptr.vmem [resolvable:$true] %s168
          %174 = dma.hbm_to_vmem [thread:$0]  %s167, 512, %s169, [#allocation6], 128, 128, 8
        $region20: #{tpu_custom_call.1} parent=11 // pred_fallthru
          _
        // Predicated region
        $region21: #{tpu_custom_call.1} parent=11 // pred_check
          %p175 = pneg %p106
        $region22: #{tpu_custom_call.1} parent=11 // pred_check_branch
          %177 = sbr.rel (%p175) target = $region24
        $region23: #{tpu_custom_call.1} parent=11 // pred_region
          _
        $region24: #{tpu_custom_call.1} parent=11 // pred_fallthru
          _
      $region12: #{tpu_custom_call.1} parent=5 // pred_fallthru
        _
      %p178 = scmp.lt.s32.totalorder %s17, 2
      // Predicated region
      $region25: #{tpu_custom_call.1} parent=5 // pred_check
        %p179 = pneg %p178
      $region26: #{tpu_custom_call.1} parent=5 // pred_check_branch
        %181 = sbr.rel (%p179) target = $region28
      $region27: #{tpu_custom_call.1} parent=5 // pred_region
        // Predicated region
        $region29: #{tpu_custom_call.1} parent=27 // pred_check
          %p182 = pneg %p37
        $region30: #{tpu_custom_call.1} parent=27 // pred_check_branch
          %184 = sbr.rel (%p182) target = $region32
        $region31: #{tpu_custom_call.1} parent=27 // pred_region
          %s185 = sand.u32 %s27, 1
          %s186 = scalar_lea.sflag [#allocation3], %s185
          %s187 = sand.u32 %s27, 1
          %s188 = smul.addr %s187, 8
          %s189 = scalar_lea.vmem [#allocation2], %s188
          %191 = vsyncadd %s186, 0
          %s192 = smul.addr %s17, 8
          %s193 = scalar_lea.hbm %s0, %s192
          %s195 = sshll.u32 %s193, 4
          %s196 = int_to_ptr.hbm [resolvable:$true] %s195
          %s197 = sshll.u32 %s189, 4
          %s198 = int_to_ptr.vmem [resolvable:$true] %s197
          %200 = dma.hbm_to_vmem [thread:$0]  %s196, 128, %s198, %s186
        $region32: #{tpu_custom_call.1} parent=27 // pred_fallthru
          _
      $region28: #{tpu_custom_call.1} parent=5 // pred_fallthru
        _
      %p201 = scmp.le.s32.totalorder 1, %s17
      %p202 = scmp.lt.s32.totalorder %s17, 3
      %p203 = pnand %p201, %p202
      %p204 = pneg %p203
      // Predicated region
      $region33: #{tpu_custom_call.1} parent=5 // pred_check
        _
      $region34: #{tpu_custom_call.1} parent=5 // pred_check_branch
        %206 = sbr.rel (%p203) target = $region36
      $region35: #{tpu_custom_call.1} parent=5 // pred_region
        %s207 = ssub.s32 %s17, 1
        %s208 = sand.u32 %s30, 1
        %s209 = scalar_lea.sflag [#allocation3], %s208
        %s210 = sand.u32 %s30, 1
        %s211 = smul.addr %s210, 8
        %s212 = scalar_lea.vmem [#allocation2], %s211
        // Predicated region
        $region37: #{tpu_custom_call.1} parent=35 // pred_check
          %p213 = pneg %p43
        $region38: #{tpu_custom_call.1} parent=35 // pred_check_branch
          %215 = sbr.rel (%p213) target = $region40
        $region39: #{tpu_custom_call.1} parent=35 // pred_region
          %217 = dma.done %s209, 128
        $region40: #{tpu_custom_call.1} parent=35 // pred_fallthru
          _
        // Predicated region
        $region41: #{tpu_custom_call.1} parent=35 // pred_check
          %p218 = pneg %p64
        $region42: #{tpu_custom_call.1} parent=35 // pred_check_branch
          %220 = sbr.rel (%p218) target = $region44
        $region43: #{tpu_custom_call.1} parent=35 // pred_region
          %222 = dma.done [#allocation6], 512
        $region44: #{tpu_custom_call.1} parent=35 // pred_fallthru
          _
        // Predicated region
        $region45: #{tpu_custom_call.1} parent=35 // pred_check
          %p223 = pneg %p85
        $region46: #{tpu_custom_call.1} parent=35 // pred_check_branch
          %225 = sbr.rel (%p223) target = $region48
        $region47: #{tpu_custom_call.1} parent=35 // pred_region
          %227 = dma.done [#allocation6], 512
        $region48: #{tpu_custom_call.1} parent=35 // pred_fallthru
          _
        %s228 = sand.u32 %s30, 1
        %s229 = scalar_lea.sflag [#allocation3], %s228
        %s230 = sand.u32 %s30, 1
        %s231 = smul.addr %s230, 8
        %s232 = scalar_lea.vmem [#allocation2], %s231
        %p233 = pneg %p43
        %p234 = pneg %p40
        %p235 = pneg %p64
        %p236 = pneg %p61
        %p237 = pneg %p85
        %p238 = pneg %p82
        %p239 = pneg %p106
        %p240 = pneg %p103
        %p241 = pneg %p132
        %p242 = pneg %p129
        %s243 = sand.u32 %s119, 1
        %s244 = scalar_lea.sflag [#allocation4], %s243
        %s245 = sand.u32 %s119, 1
        %s246 = smul.addr %s245, 8
        %s247 = scalar_lea.vmem [#allocation8], %s246
        %v249 = vld [vmem:[%s212] sm:$0xff]
        %v250 = vpack.c.bf16 %v249, %v249
        %v251 = vld [vmem:[#allocation5] sm:$0xff]
        %v252 = vld [vmem:[#allocation5 + $0x8] sm:$0xff]
        %v253 = vld [vmem:[#allocation5 + $0x10] sm:$0xff]
        %v254 = vld [vmem:[#allocation5 + $0x18] sm:$0xff]
        %v255 = vpack.c.bf16 %v252, %v251
        %v256 = vpack.c.bf16 %v254, %v253
        %v257 = vld [vmem:[#allocation7] sm:$0xff]
        %v258 = vld [vmem:[#allocation7 + $0x8] sm:$0xff]
        %v259 = vld [vmem:[#allocation7 + $0x10] sm:$0xff]
        %v260 = vld [vmem:[#allocation7 + $0x18] sm:$0xff]
        %v261 = vpack.c.bf16 %v257, %v257
        %v262 = vpack.c.bf16 %v258, %v258
        %v263 = vpack.c.bf16 %v259, %v259
        %v264 = vpack.c.bf16 %v260, %v260
        %vm265 = vcmask 261120
        %v267 = vsel %vm265, %v250, 0
        %269 = vmatpush.bf16.msra.mxu0 0
        %270 = vmatpush.bf16.msra.mxu0 0
        %271 = vmatpush.bf16.msra.mxu0 0
        %272 = vmatpush.bf16.msra.mxu0 0
        %273 = vmatpush.bf16.msra.mxu0 0
        %274 = vmatpush.bf16.msra.mxu0 0
        %275 = vmatpush.bf16.msra.mxu0 %v256
        %276 = vmatpush.bf16.msra.mxu0 %v255
        %277 = vmatmul.bf16.gmra.mxu0 %v267
        %v278 = vpop.f32.mrf.mxu0
        %v279 = vadd.f32 0.0, %v278
        %v280 = vpop.f32.mrf.mxu0
        %281 = vdwg.mxu0
        %v282 = vpack.c.bf16 %v279, %v279
        %284 = vrot.lane.b32.xlu0 %v282, 96
        %v285 = vpop.permute.xlu0 %284
        %vm286 = vcmask 64512
        %v288 = vsel %vm286, %v282, 0
        %v291 = vsel %vm286, %v285, 0
        %293 = vmatpush.bf16.xpose.msra.mxu0 0
        %294 = vmatpush.bf16.xpose.msra.mxu0 0
        %295 = vmatpush.bf16.xpose.msra.mxu0 0
        %296 = vmatpush.bf16.xpose.msra.mxu0 0
        %297 = vmatpush.bf16.xpose.msra.mxu0 0
        %298 = vmatpush.bf16.xpose.msra.mxu0 0
        %299 = vmatpush.bf16.xpose.msra.mxu0 0
        %300 = vmatpush.bf16.xpose.msra.mxu0 %v291
        %301 = vmatmul.bf16.gmra.mxu0 %v288
        %v302 = vpop.f32.mrf.mxu0
        %v303 = vadd.f32 0.0, %v302
        %v304 = vpop.f32.mrf.mxu0
        %305 = vdwg.mxu0
        %v306 = vmul.f32 %v303, 0.35355338
        %v307 = vsel %vm286, %v306, -inf
        %308 = vmax.xlane.f32.xlu0 %v307
        %v309 = vpop.xlane.xlu0 %308
        %v310 = vsub.f32 %v306, %v309
        %v311 = vmul.f32 %v310, 1.442695
        %v312 = vpow.pop %v311
        %v313 = vsel %vm286, %v312, 0.0
        %314 = vadd.xlane.f32.xlu0 %v313
        %v315 = vpop.xlane.xlu0 %314
        %v316 = vrcp.pop %v315
        %v317 = vmul.f32 %v312, %v316
        %v318 = vpack.c.bf16 %v317, %v317
        %319 = vrot.lane.b32.xlu0 %v282, 64
        %v320 = vpop.permute.xlu0 %319
        %v322 = vsel %vm286, %v318, 0
        %vm324 = vcmask 1043456
        %v326 = vsel %vm324, %v320, 0
        %328 = vmatpush.bf16.msra.mxu0 0
        %329 = vmatpush.bf16.msra.mxu0 0
        %330 = vmatpush.bf16.msra.mxu0 0
        %331 = vmatpush.bf16.msra.mxu0 0
        %332 = vmatpush.bf16.msra.mxu0 0
        %333 = vmatpush.bf16.msra.mxu0 0
        %334 = vmatpush.bf16.msra.mxu0 0
        %335 = vmatpush.bf16.msra.mxu0 %v326
        %336 = vmatmul.bf16.gmra.mxu0 %v322
        %v337 = vpop.f32.mrf.mxu0
        %v338 = vadd.f32 0.0, %v337
        %v339 = vpop.f32.mrf.mxu0
        %340 = vdwg.mxu0
        %v341 = vpack.c.bf16 %v338, %v338
        %342 = vrot.lane.b32.xlu0 %v282, 120
        %v343 = vpop.permute.xlu0 %342
        %344 = vrot.lane.b32.xlu0 %v282, 88
        %v345 = vpop.permute.xlu0 %344
        %v347 = vsel %vm286, %v343, 0
        %v350 = vsel %vm286, %v345, 0
        %352 = vmatpush.bf16.xpose.msra.mxu0 0
        %353 = vmatpush.bf16.xpose.msra.mxu0 0
        %354 = vmatpush.bf16.xpose.msra.mxu0 0
        %355 = vmatpush.bf16.xpose.msra.mxu0 0
        %356 = vmatpush.bf16.xpose.msra.mxu0 0
        %357 = vmatpush.bf16.xpose.msra.mxu0 0
        %358 = vmatpush.bf16.xpose.msra.mxu0 0
        %359 = vmatpush.bf16.xpose.msra.mxu0 %v350
        %360 = vmatmul.bf16.gmra.mxu0 %v347
        %v361 = vpop.f32.mrf.mxu0
        %v362 = vadd.f32 0.0, %v361
        %v363 = vpop.f32.mrf.mxu0
        %364 = vdwg.mxu0
        %v365 = vmul.f32 %v362, 0.35355338
        %v366 = vsel %vm286, %v365, -inf
        %367 = vmax.xlane.f32.xlu0 %v366
        %v368 = vpop.xlane.xlu0 %367
        %v369 = vsub.f32 %v365, %v368
        %v370 = vmul.f32 %v369, 1.442695
        %v371 = vpow.pop %v370
        %v372 = vsel %vm286, %v371, 0.0
        %373 = vadd.xlane.f32.xlu0 %v372
        %v374 = vpop.xlane.xlu0 %373
        %v375 = vrcp.pop %v374
        %v376 = vmul.f32 %v371, %v375
        %v377 = vpack.c.bf16 %v376, %v376
        %378 = vrot.lane.b32.xlu0 %v282, 56
        %v379 = vpop.permute.xlu0 %378
        %v381 = vsel %vm286, %v377, 0
        %v384 = vsel %vm324, %v379, 0
        %386 = vmatpush.bf16.msra.mxu0 0
        %387 = vmatpush.bf16.msra.mxu0 0
        %388 = vmatpush.bf16.msra.mxu0 0
        %389 = vmatpush.bf16.msra.mxu0 0
        %390 = vmatpush.bf16.msra.mxu0 0
        %391 = vmatpush.bf16.msra.mxu0 0
        %392 = vmatpush.bf16.msra.mxu0 0
        %393 = vmatpush.bf16.msra.mxu0 %v384
        %394 = vmatmul.bf16.gmra.mxu0 %v381
        %v395 = vpop.f32.mrf.mxu0
        %v396 = vadd.f32 0.0, %v395
        %v397 = vpop.f32.mrf.mxu0
        %398 = vdwg.mxu0
        %v399 = vpack.c.bf16 %v396, %v396
        %v401 = vsel %vm286, %v399, 0
        %v404 = vsel %vm324, %v262, 0
        %406 = vmatpush.bf16.msra.mxu0 0
        %407 = vmatpush.bf16.msra.mxu0 0
        %408 = vmatpush.bf16.msra.mxu0 0
        %409 = vmatpush.bf16.msra.mxu0 0
        %410 = vmatpush.bf16.msra.mxu0 0
        %411 = vmatpush.bf16.msra.mxu0 0
        %412 = vmatpush.bf16.msra.mxu0 0
        %413 = vmatpush.bf16.msra.mxu0 %v404
        %414 = vmatmul.bf16.gmra.mxu0 %v401
        %v415 = vpop.f32.mrf.mxu0
        %v416 = vadd.f32 0.0, %v415
        %v417 = vpop.f32.mrf.mxu0
        %418 = vdwg.mxu0
        %v420 = vsel %vm286, %v341, 0
        %v423 = vsel %vm324, %v261, 0
        %425 = vmatpush.bf16.msra.mxu0 0
        %426 = vmatpush.bf16.msra.mxu0 0
        %427 = vmatpush.bf16.msra.mxu0 0
        %428 = vmatpush.bf16.msra.mxu0 0
        %429 = vmatpush.bf16.msra.mxu0 0
        %430 = vmatpush.bf16.msra.mxu0 0
        %431 = vmatpush.bf16.msra.mxu0 0
        %432 = vmatpush.bf16.msra.mxu0 %v423
        %433 = vmatmul.bf16.gmra.mxu0 %v420
        %v434 = vpop.f32.mrf.mxu0
        %v435 = vadd.f32 %v416, %v434
        %v436 = vpop.f32.mrf.mxu0
        %437 = vdwg.mxu0
        %438 = vrot.lane.b32.xlu0 %v282, 112
        %v439 = vpop.permute.xlu0 %438
        %440 = vrot.lane.b32.xlu0 %v282, 80
        %v441 = vpop.permute.xlu0 %440
        %v443 = vsel %vm286, %v439, 0
        %v446 = vsel %vm286, %v441, 0
        %448 = vmatpush.bf16.xpose.msra.mxu0 0
        %449 = vmatpush.bf16.xpose.msra.mxu0 0
        %450 = vmatpush.bf16.xpose.msra.mxu0 0
        %451 = vmatpush.bf16.xpose.msra.mxu0 0
        %452 = vmatpush.bf16.xpose.msra.mxu0 0
        %453 = vmatpush.bf16.xpose.msra.mxu0 0
        %454 = vmatpush.bf16.xpose.msra.mxu0 0
        %455 = vmatpush.bf16.xpose.msra.mxu0 %v446
        %456 = vmatmul.bf16.gmra.mxu0 %v443
        %v457 = vpop.f32.mrf.mxu0
        %v458 = vadd.f32 0.0, %v457
        %v459 = vpop.f32.mrf.mxu0
        %460 = vdwg.mxu0
        %v461 = vmul.f32 %v458, 0.35355338
        %v462 = vsel %vm286, %v461, -inf
        %463 = vmax.xlane.f32.xlu0 %v462
        %v464 = vpop.xlane.xlu0 %463
        %v465 = vsub.f32 %v461, %v464
        %v466 = vmul.f32 %v465, 1.442695
        %v467 = vpow.pop %v466
        %v468 = vsel %vm286, %v467, 0.0
        %469 = vadd.xlane.f32.xlu0 %v468
        %v470 = vpop.xlane.xlu0 %469
        %v471 = vrcp.pop %v470
        %v472 = vmul.f32 %v467, %v471
        %v473 = vpack.c.bf16 %v472, %v472
        %474 = vrot.lane.b32.xlu0 %v282, 48
        %v475 = vpop.permute.xlu0 %474
        %v477 = vsel %vm286, %v473, 0
        %v480 = vsel %vm324, %v475, 0
        %482 = vmatpush.bf16.msra.mxu0 0
        %483 = vmatpush.bf16.msra.mxu0 0
        %484 = vmatpush.bf16.msra.mxu0 0
        %485 = vmatpush.bf16.msra.mxu0 0
        %486 = vmatpush.bf16.msra.mxu0 0
        %487 = vmatpush.bf16.msra.mxu0 0
        %488 = vmatpush.bf16.msra.mxu0 0
        %489 = vmatpush.bf16.msra.mxu0 %v480
        %490 = vmatmul.bf16.gmra.mxu0 %v477
        %v491 = vpop.f32.mrf.mxu0
        %v492 = vadd.f32 0.0, %v491
        %v493 = vpop.f32.mrf.mxu0
        %494 = vdwg.mxu0
        %v495 = vpack.c.bf16 %v492, %v492
        %v497 = vsel %vm286, %v495, 0
        %v500 = vsel %vm324, %v263, 0
        %502 = vmatpush.bf16.msra.mxu0 0
        %503 = vmatpush.bf16.msra.mxu0 0
        %504 = vmatpush.bf16.msra.mxu0 0
        %505 = vmatpush.bf16.msra.mxu0 0
        %506 = vmatpush.bf16.msra.mxu0 0
        %507 = vmatpush.bf16.msra.mxu0 0
        %508 = vmatpush.bf16.msra.mxu0 0
        %509 = vmatpush.bf16.msra.mxu0 %v500
        %510 = vmatmul.bf16.gmra.mxu0 %v497
        %v511 = vpop.f32.mrf.mxu0
        %v512 = vadd.f32 0.0, %v511
        %v513 = vpop.f32.mrf.mxu0
        %514 = vdwg.mxu0
        %v515 = vadd.f32 %v435, %v512
        %516 = vrot.lane.b32.xlu0 %v282, 104
        %v517 = vpop.permute.xlu0 %516
        %518 = vrot.lane.b32.xlu0 %v282, 72
        %v519 = vpop.permute.xlu0 %518
        %v521 = vsel %vm286, %v517, 0
        %v524 = vsel %vm286, %v519, 0
        %526 = vmatpush.bf16.xpose.msra.mxu0 0
        %527 = vmatpush.bf16.xpose.msra.mxu0 0
        %528 = vmatpush.bf16.xpose.msra.mxu0 0
        %529 = vmatpush.bf16.xpose.msra.mxu0 0
        %530 = vmatpush.bf16.xpose.msra.mxu0 0
        %531 = vmatpush.bf16.xpose.msra.mxu0 0
        %532 = vmatpush.bf16.xpose.msra.mxu0 0
        %533 = vmatpush.bf16.xpose.msra.mxu0 %v524
        %534 = vmatmul.bf16.gmra.mxu0 %v521
        %v535 = vpop.f32.mrf.mxu0
        %v536 = vadd.f32 0.0, %v535
        %v537 = vpop.f32.mrf.mxu0
        %538 = vdwg.mxu0
        %v539 = vmul.f32 %v536, 0.35355338
        %v540 = vsel %vm286, %v539, -inf
        %541 = vmax.xlane.f32.xlu0 %v540
        %v542 = vpop.xlane.xlu0 %541
        %v543 = vsub.f32 %v539, %v542
        %v544 = vmul.f32 %v543, 1.442695
        %v545 = vpow.pop %v544
        %v546 = vsel %vm286, %v545, 0.0
        %547 = vadd.xlane.f32.xlu0 %v546
        %v548 = vpop.xlane.xlu0 %547
        %v549 = vrcp.pop %v548
        %v550 = vmul.f32 %v545, %v549
        %v551 = vpack.c.bf16 %v550, %v550
        %552 = vrot.lane.b32.xlu0 %v282, 40
        %v553 = vpop.permute.xlu0 %552
        %v555 = vsel %vm286, %v551, 0
        %v558 = vsel %vm324, %v553, 0
        %560 = vmatpush.bf16.msra.mxu0 0
        %561 = vmatpush.bf16.msra.mxu0 0
        %562 = vmatpush.bf16.msra.mxu0 0
        %563 = vmatpush.bf16.msra.mxu0 0
        %564 = vmatpush.bf16.msra.mxu0 0
        %565 = vmatpush.bf16.msra.mxu0 0
        %566 = vmatpush.bf16.msra.mxu0 0
        %567 = vmatpush.bf16.msra.mxu0 %v558
        %568 = vmatmul.bf16.gmra.mxu0 %v555
        %v569 = vpop.f32.mrf.mxu0
        %v570 = vadd.f32 0.0, %v569
        %v571 = vpop.f32.mrf.mxu0
        %572 = vdwg.mxu0
        %v573 = vpack.c.bf16 %v570, %v570
        %v575 = vsel %vm286, %v573, 0
        %v578 = vsel %vm324, %v264, 0
        %580 = vmatpush.bf16.msra.mxu0 0
        %581 = vmatpush.bf16.msra.mxu0 0
        %582 = vmatpush.bf16.msra.mxu0 0
        %583 = vmatpush.bf16.msra.mxu0 0
        %584 = vmatpush.bf16.msra.mxu0 0
        %585 = vmatpush.bf16.msra.mxu0 0
        %586 = vmatpush.bf16.msra.mxu0 0
        %587 = vmatpush.bf16.msra.mxu0 %v578
        %588 = vmatmul.bf16.gmra.mxu0 %v575
        %v589 = vpop.f32.mrf.mxu0
        %v590 = vadd.f32 0.0, %v589
        %v591 = vpop.f32.mrf.mxu0
        %592 = vdwg.mxu0
        %v593 = vadd.f32 %v515, %v590
        %v594 = vld [vmem:[%s3] sm:$0x1]
        %v596 = vperm.slane %v594, 0
        %v598 = vadd.f32 %v593, %v596
        %599 = vst.msk [vmem:[%s247] sm:$0xff] %vm265, %v598
        %s600 = sand.u32 %s119, 1
        %s601 = scalar_lea.sflag [#allocation4], %s600
        %s602 = sand.u32 %s119, 1
        %s603 = smul.addr %s602, 8
        %s604 = scalar_lea.vmem [#allocation8], %s603
        // Predicated region
        $region49: #{tpu_custom_call.1} parent=35 // pred_check
          %p605 = pneg %p129
        $region50: #{tpu_custom_call.1} parent=35 // pred_check_branch
          %607 = sbr.rel (%p605) target = $region52
        $region51: #{tpu_custom_call.1} parent=35 // pred_region
          %609 = vsyncadd %s601, 0
          %s610 = smul.addr %s22, 8
          %s611 = scalar_lea.hbm %s4, %s610
          %s613 = sshll.u32 %s604, 4
          %s614 = int_to_ptr.vmem [resolvable:$true] %s613
          %s615 = sshll.u32 %s611, 4
          %s616 = int_to_ptr.hbm [resolvable:$true] %s615
          %618 = dma.vmem_to_hbm [thread:$0]  %s614, 128, %s616, %s601
        $region52: #{tpu_custom_call.1} parent=35 // pred_fallthru
          _
      $region36: #{tpu_custom_call.1} parent=5 // pred_fallthru
        _
      %p619 = scmp.le.s32.totalorder 2, %s17
      // Predicated region
      $region53: #{tpu_custom_call.1} parent=5 // pred_check
        %p620 = pneg %p619
      $region54: #{tpu_custom_call.1} parent=5 // pred_check_branch
        %622 = sbr.rel (%p620) target = $region56
      $region55: #{tpu_custom_call.1} parent=5 // pred_region
        %s623 = ssub.s32 %s17, 2
        // Predicated region
        $region57: #{tpu_custom_call.1} parent=55 // pred_check
          %p624 = pneg %p135
        $region58: #{tpu_custom_call.1} parent=55 // pred_check_branch
          %626 = sbr.rel (%p624) target = $region60
        $region59: #{tpu_custom_call.1} parent=55 // pred_region
          %s627 = sand.u32 %s120, 1
          %s628 = scalar_lea.sflag [#allocation4], %s627
          %s629 = sand.u32 %s120, 1
          %s630 = smul.addr %s629, 8
          %s631 = scalar_lea.vmem [#allocation8], %s630
          %633 = dma.done %s628, 128
        $region60: #{tpu_custom_call.1} parent=55 // pred_fallthru
          _
      $region56: #{tpu_custom_call.1} parent=5 // pred_fallthru
        _
    $region6: #{tpu_custom_call.1} parent=1 // loop_footer
      %s21 = sadd.s32 1, %s17
    $region7: #{tpu_custom_call.1} parent=1 // loop_footer_branch
      %16 = sbr.rel target = $region3
    $region8: #{tpu_custom_call.1} parent=1 // loop_exit
      _
    %634 = vsyncpa [#allocation3], 1
    %s635 = scalar_lea.sflag [#allocation3], 1
    %636 = vsyncpa %s635, 1
    %637 = vsyncpa [#allocation6], 1
    %638 = vsyncpa [#allocation4], 1
    %s639 = scalar_lea.sflag [#allocation4], 1
    %640 = vsyncpa %s639, 1

</llo_original>
